<compile_context>
chip_gen: v7x
topology: tpu7x:2x2x1
jax: 0.10.0
libtpu: 0.0.40
codegen_flags: <defaults>
</compile_context>

<pallas_src>
import functools
import math

import jax
import jax.numpy as jnp
import numpy as np
from jax import lax
from jax.experimental import pallas as pl
from jax.experimental.pallas import tpu as pltpu

NEG_SLOPE = 0.01      # nn.LeakyReLU default negative_slope
_MASK_VALUE = -1e30   # finite "-inf": exp(x - max) underflows to 0 for N >= 2


def _leaky_relu(x):
    return jnp.where(x >= 0, x, NEG_SLOPE * x)


def ray_transformer_kernel(x_ref, wx_ref, w1y_ref, wst_ref, b_ref, o_ref):
    TB, N, C = x_ref.shape
    vdim = w1y_ref.shape[0]
    kdim = (wx_ref.shape[1] - C - vdim) // 2
    R = TB * N
    f32 = jnp.float32
    dot = functools.partial(jnp.dot, preferred_element_type=f32)

    # Upcast bf16 inputs to f32 in-register: the MXU truncates operands to bf16
    # at default precision anyway, and keeping the elementwise chain in f32
    # avoids bf16 VALU/EUP work (v5e has no bf16 vector units).
    # Row flatten is layout-free when N % 8 == 0 (f32 sublane tile); other N is
    # correct but inserts a small per-step relayout.
    x = x_ref[...].astype(f32).reshape(R, C)
    wx = wx_ref[...].astype(f32)
    w1y = w1y_ref[...].astype(f32)
    wst = wst_ref[...].astype(f32)
    b = b_ref[...]                                   # biases kept f32

    # One fused matmul against the packed weights:
    #   [ x@W1x | q*scale | k | v ]  (+ fused biases incl. b1).
    # w1x occupies lanes [0, C) so the later xw1 + y@W1y add is lane-aligned.
    xcat = dot(x, wx) + b[0:1, :]
    xw1 = xcat[:, :C]
    q = xcat[:, C:C + kdim]
    k = xcat[:, C + kdim:C + 2 * kdim]
    v = xcat[:, C + 2 * kdim:]

    # ---- norm1 = Identity; batched single-head attention, self masked out ----
    q3 = q.reshape(TB, N, kdim)
    k3 = k.reshape(TB, N, kdim)
    v3 = v.reshape(TB, N, vdim)
    s = jnp.einsum("bqd,bkd->bqk", q3, k3, preferred_element_type=f32)
    row = lax.broadcasted_iota(jnp.int32, (N, N), 0)
    col = lax.broadcasted_iota(jnp.int32, (N, N), 1)
    s = jnp.where((row == col)[None], _MASK_VALUE, s)
    m = jnp.max(s, axis=-1, keepdims=True)
    e = jnp.exp(s - m)
    l = jnp.sum(e, axis=-1, keepdims=True)
    # Deferred normalization: scale the (TB,N,vdim) result once instead of
    # dividing the (TB,N,N) score slab; reciprocal goes to the (idle) EUP slot.
    y_un = jnp.einsum("bqk,bkd->bqd", e, v3, preferred_element_type=f32)
    y = (y_un * pl.reciprocal(l, approx=True)).reshape(R, vdim)

    # ---- proj_seq: MLP(c+vdim, [c, c]) on concat([x, y]) (split W1) ----
    h = _leaky_relu(xw1 + dot(y, w1y))
    p = dot(h, wst[0]) + b[1:2, :C]
    x2 = x + p                                       # residual, f32

    # ---- norm2 = Identity; out: MLP(c, [c, c]) ----
    h2 = _leaky_relu(dot(x2, wst[1]) + b[2:3, :C])
    out = dot(h2, wst[2]) + b[3:4, :C]
    o_ref[...] = out.reshape(TB, N, C).astype(o_ref.dtype)


def _tensorcores_per_chip():
    """Best-effort TensorCore-per-chip count (perf-only; safe default 1)."""
    try:
        kind = jax.devices()[0].device_kind.lower()
    except Exception:
        return 1
    if "v5 lite" in kind or "v5e" in kind or "v6 lite" in kind or "v6e" in kind:
        return 1                       # single-TensorCore chips
    if "v4" in kind or "v5p" in kind or "v5" in kind or "v7" in kind or "7x" in kind:
        return 2                       # megacore / dual-TC chips
    return 1


def _pick_tiling(B, N, target_rows, cores):
    """Choose (batch tile, grid length).  tile*grid may exceed B (wrapper pads).

    Single-TC (v5e/v6e): one big step (grid=1) whenever the batch fits the row
    target -- splitting only adds per-step overhead.  Dual-TC (v4/v5p/v7x):
    keep an even grid >= 2 so the 'parallel' axis splits evenly across cores.
    """
    tb = max(1, -(-target_rows // max(N, 1)))        # ceil(target_rows / N)
    if cores >= 2 and B >= 2:
        tb = min(tb, -(-B // 2))                     # at least two real steps
        grid = -(-B // tb)
        if grid % 2:
            grid += 1                                # even split across 2 TCs
    else:
        tb = min(tb, B)
        grid = -(-B // tb)
    return tb, grid


def pack_params(params, weight_dtype=jnp.bfloat16):
    """One-time packing of the 7 Linear layers into 4 arrays (hoisted out of
    the per-call path).  Scale 1/sqrt(kdim) is folded into the Q columns."""
    C = params["w2"].shape[0]
    kdim = params["wq"].shape[1]
    scale = 1.0 / math.sqrt(kdim)
    w1x, w1y = params["w1"][:C], params["w1"][C:]

    # Column order [w1x | wq*scale | wk | wv] keeps the xw1 slice lane-aligned.
    wx = jnp.concatenate(
        [w1x, params["wq"] * scale, params["wk"], params["wv"]], axis=1)
    b0 = jnp.concatenate(
        [params["b1"], params["bq"] * scale, params["bk"], params["bv"]], axis=1)
    wdim = wx.shape[1]

    def pad_bias(bias):
        return jnp.pad(bias, ((0, 0), (0, wdim - bias.shape[1])))

    ball = jnp.concatenate(
        [b0, pad_bias(params["b2"]), pad_bias(params["b3"]),
         pad_bias(params["b4"])], axis=0)                         # (4, wdim) f32
    wstack = jnp.stack([params["w2"], params["w3"], params["w4"]])  # (3, C, C)

    return dict(wx=wx.astype(weight_dtype),
                w1y=w1y.astype(weight_dtype),
                wstack=wstack.astype(weight_dtype),
                ball=ball.astype(jnp.float32))


def ray_transformer_block(x, packed, *, target_rows=1024, x_dtype=jnp.bfloat16):
    B, N, C = x.shape
    wdim = packed["wx"].shape[1]
    vdim = packed["w1y"].shape[0]

    cores = _tensorcores_per_chip()
    tb, grid = _pick_tiling(B, N, target_rows, cores)
    Bp = tb * grid

    xin = x.astype(x_dtype)
    if Bp != B:                                       # tail path: pad batch up
        xin = jnp.pad(xin, ((0, Bp - B), (0, 0), (0, 0)))

    def const_spec(shape):
        nd = len(shape)
        return pl.BlockSpec(shape, lambda b, _nd=nd: (0,) * _nd)

    out = pl.pallas_call(
        ray_transformer_kernel,
        out_shape=jax.ShapeDtypeStruct((Bp, N, C), jnp.float32),
        grid_spec=pltpu.PrefetchScalarGridSpec(
            num_scalar_prefetch=0,
            grid=(grid,),
            in_specs=[
                pl.BlockSpec((tb, N, C), lambda b: (b, 0, 0)),   # x slab
                const_spec((C, wdim)),                           # w1x|wq*s|wk|wv
                const_spec((vdim, C)),                           # w1y
                const_spec((3, C, C)),                           # w2|w3|w4
                const_spec((4, wdim)),                           # all biases
            ],
            out_specs=pl.BlockSpec((tb, N, C), lambda b: (b, 0, 0)),
        ),
        compiler_params=pltpu.CompilerParams(
            dimension_semantics=("parallel",)),
    )(xin, packed["wx"], packed["w1y"], packed["wstack"], packed["ball"])

    return out[:B] if Bp != B else out


def init_params(key, c, kdim, vdim):
    """Deterministic nn.Linear-style init: U(-1/sqrt(fan_in), 1/sqrt(fan_in))."""
    def linear(k, fan_in, fan_out):
        kw, kb = jax.random.split(k)
        bound = 1.0 / math.sqrt(fan_in)
        w = jax.random.uniform(kw, (fan_in, fan_out), jnp.float32, -bound, bound)
        b = jax.random.uniform(kb, (1, fan_out), jnp.float32, -bound, bound)
        return w, b

    ks = jax.random.split(key, 7)
    wq, bq = linear(ks[0], c, kdim)
    wk, bk = linear(ks[1], c, kdim)
    wv, bv = linear(ks[2], c, vdim)
    w1, b1 = linear(ks[3], c + vdim, c)
    w2, b2 = linear(ks[4], c, c)
    w3, b3 = linear(ks[5], c, c)
    w4, b4 = linear(ks[6], c, c)
    return dict(wq=wq, bq=bq, wk=wk, bk=bk, wv=wv, bv=bv,
                w1=w1, b1=b1, w2=w2, b2=b2, w3=w3, b3=b3, w4=w4, b4=b4)


def reference(x, params):
    """Pure-JAX f32 reference of the PyTorch forward."""
    kdim = params["wq"].shape[1]
    N = x.shape[-2]
    q = x @ params["wq"] + params["bq"]
    k = x @ params["wk"] + params["bk"]
    v = x @ params["wv"] + params["bv"]
    scores = jnp.einsum("bqd,bkd->bqk", q, k) * (kdim ** -0.5)
    eye = jnp.eye(N, dtype=bool)
    scores = jnp.where(eye[None], -jnp.inf, scores)
    attn = jax.nn.softmax(scores, axis=-1)
    y = attn @ v
    cat = jnp.concatenate([x, y], axis=-1)
    h = _leaky_relu(cat @ params["w1"] + params["b1"])
    p = h @ params["w2"] + params["b2"]
    x2 = x + p
    h2 = _leaky_relu(x2 @ params["w3"] + params["b3"])
    return h2 @ params["w4"] + params["b4"]


if __name__ == "__main__":
    fwd = jax.jit(ray_transformer_block,
                  static_argnames=("target_rows", "x_dtype"))

    # (B, N, C, kdim, vdim, target_rows): small configs; the last one forces a
    # multi-step grid with a padded batch tail.
    configs = [
        (2, 8, 32, 16, 16, 1024),
        (8, 8, 32, 16, 16, 1024),
        (13, 8, 32, 16, 16, 32),
    ]
    key = jax.random.PRNGKey(0)
    for (B, N, C, KDIM, VDIM, TR) in configs:
        key, kx, kp = jax.random.split(key, 3)
        x = jax.random.normal(kx, (B, N, C), jnp.float32)
        params = init_params(kp, C, KDIM, VDIM)
        packed = pack_params(params)                 # one-time packing

        out = jax.block_until_ready(fwd(x, packed, target_rows=TR))
        ref = jax.block_until_ready(reference(x, params))

        # Tolerance covers default-precision (bf16-operand) MXU matmuls, the
        # bf16 cast of x on the residual path, the approximate reciprocal in
        # the softmax, and fused/split accumulation-order differences.
        np.testing.assert_allclose(np.asarray(out), np.asarray(ref),
                                   rtol=2e-2, atol=3e-2)
        assert out.shape == (B, N, C) and np.isfinite(np.asarray(out)).all()
    print("KERNEL_OK")
</pallas_src>

<mosaic_0001>
module attributes {stable_mosaic.version = 11 : i64} {
  func.func @ray_transformer_kernel(%arg0: i32, %arg1: memref<2x8x32xbf16, #tpu.memory_space<vmem>>, %arg2: memref<32x80xbf16, #tpu.memory_space<vmem>>, %arg3: memref<16x32xbf16, #tpu.memory_space<vmem>>, %arg4: memref<3x32x32xbf16, #tpu.memory_space<vmem>>, %arg5: memref<4x80xf32, #tpu.memory_space<vmem>>, %arg6: memref<2x8x32xf32, #tpu.memory_space<vmem>>) attributes {dimension_semantics = [#tpu.dimension_semantics<parallel>], iteration_bounds = array<i64: 1>, scalar_prefetch = 0 : i64, scratch_operands = 0 : i64, tpu.core_type = #tpu.core_type<tc>, window_params = [{transform_indices = @transform_0, window_bounds = array<i64: 2, 8, 32>}, {pipeline_mode = #tpu.pipeline_mode<synchronous>, transform_indices = @transform_1, window_bounds = array<i64: 32, 80>}, {pipeline_mode = #tpu.pipeline_mode<synchronous>, transform_indices = @transform_2, window_bounds = array<i64: 16, 32>}, {pipeline_mode = #tpu.pipeline_mode<synchronous>, transform_indices = @transform_3, window_bounds = array<i64: 3, 32, 32>}, {pipeline_mode = #tpu.pipeline_mode<synchronous>, transform_indices = @transform_4, window_bounds = array<i64: 4, 80>}, {transform_indices = @transform_5, window_bounds = array<i64: 2, 8, 32>}]} {
    %c0 = arith.constant 0 : index
    %c0_0 = arith.constant 0 : index
    %c0_1 = arith.constant 0 : index
    %0 = vector.load %arg1[%c0, %c0_0, %c0_1] : memref<2x8x32xbf16, #tpu.memory_space<vmem>>, vector<2x8x32xbf16>
    %1 = arith.extf %0 : vector<2x8x32xbf16> to vector<2x8x32xf32>
    %2 = vector.shape_cast %1 : vector<2x8x32xf32> to vector<16x32xf32>
    %c0_2 = arith.constant 0 : index
    %c0_3 = arith.constant 0 : index
    %3 = vector.load %arg2[%c0_2, %c0_3] : memref<32x80xbf16, #tpu.memory_space<vmem>>, vector<32x80xbf16>
    %4 = arith.extf %3 : vector<32x80xbf16> to vector<32x80xf32>
    %c0_4 = arith.constant 0 : index
    %c0_5 = arith.constant 0 : index
    %5 = vector.load %arg3[%c0_4, %c0_5] : memref<16x32xbf16, #tpu.memory_space<vmem>>, vector<16x32xbf16>
    %6 = arith.extf %5 : vector<16x32xbf16> to vector<16x32xf32>
    %c0_6 = arith.constant 0 : index
    %c0_7 = arith.constant 0 : index
    %c0_8 = arith.constant 0 : index
    %7 = vector.load %arg4[%c0_6, %c0_7, %c0_8] : memref<3x32x32xbf16, #tpu.memory_space<vmem>>, vector<3x32x32xbf16>
    %8 = arith.extf %7 : vector<3x32x32xbf16> to vector<3x32x32xf32>
    %c0_9 = arith.constant 0 : index
    %c0_10 = arith.constant 0 : index
    %9 = vector.load %arg5[%c0_9, %c0_10] : memref<4x80xf32, #tpu.memory_space<vmem>>, vector<4x80xf32>
    %cst = arith.constant dense<0.000000e+00> : vector<16x80xf32>
    %10 = tpu.matmul %2, %4, %cst {dimension_numbers = #tpu.dot_dimension_numbers<[1], [0], [0], [1], [0, 0, 1, 1], [], []>} : vector<16x32xf32>, vector<32x80xf32>, vector<16x80xf32> -> vector<16x80xf32>
    %11 = vector.extract_strided_slice %9 {offsets = [0, 0], sizes = [1, 80], strides = [1, 1]} : vector<4x80xf32> to vector<1x80xf32>
    %12 = vector.broadcast %11 : vector<1x80xf32> to vector<16x80xf32>
    %13 = arith.addf %10, %12 : vector<16x80xf32>
    %14 = vector.extract_strided_slice %13 {offsets = [0, 0], sizes = [16, 32], strides = [1, 1]} : vector<16x80xf32> to vector<16x32xf32>
    %15 = vector.extract_strided_slice %13 {offsets = [0, 32], sizes = [16, 16], strides = [1, 1]} : vector<16x80xf32> to vector<16x16xf32>
    %16 = vector.extract_strided_slice %13 {offsets = [0, 48], sizes = [16, 16], strides = [1, 1]} : vector<16x80xf32> to vector<16x16xf32>
    %17 = vector.extract_strided_slice %13 {offsets = [0, 64], sizes = [16, 16], strides = [1, 1]} : vector<16x80xf32> to vector<16x16xf32>
    %18 = vector.shape_cast %15 : vector<16x16xf32> to vector<2x8x16xf32>
    %19 = vector.shape_cast %16 : vector<16x16xf32> to vector<2x8x16xf32>
    %20 = vector.shape_cast %17 : vector<16x16xf32> to vector<2x8x16xf32>
    "tpu.trace_start"() <{level = 10 : i32, message = "bqd,bkd->bqk"}> : () -> ()
    %cst_11 = arith.constant dense<0.000000e+00> : vector<2x8x8xf32>
    %21 = tpu.matmul %18, %19, %cst_11 {dimension_numbers = #tpu.dot_dimension_numbers<[2], [2], [1], [1], [0, 0, 0, 1, 1, 1], [0], [0]>} : vector<2x8x16xf32>, vector<2x8x16xf32>, vector<2x8x8xf32> -> vector<2x8x8xf32>
    "tpu.trace_stop"() : () -> ()
    %22 = tpu.iota {dimensions = array<i32: 0>} : vector<8x8xi32>
    %23 = tpu.iota {dimensions = array<i32: 1>} : vector<8x8xi32>
    %24 = arith.cmpi eq, %22, %23 : vector<8x8xi32>
    %25 = vector.shape_cast %24 : vector<8x8xi1> to vector<1x8x8xi1>
    %cst_12 = arith.constant -1.000000e+30 : f32
    %26 = vector.shape_cast %25 : vector<1x8x8xi1> to vector<1x8x8xi1>
    %27 = vector.broadcast %26 : vector<1x8x8xi1> to vector<2x8x8xi1>
    %28 = vector.broadcast %cst_12 : f32 to vector<2x8x8xf32>
    %29 = arith.select %27, %28, %21 : vector<2x8x8xi1>, vector<2x8x8xf32>
    %cst_13 = arith.constant dense<0xFF800000> : vector<2x8xf32>
    %30 = vector.multi_reduction <maximumf>, %29, %cst_13 [2] : vector<2x8x8xf32> to vector<2x8xf32>
    %31 = vector.shape_cast %30 : vector<2x8xf32> to vector<2x8x1xf32>
    %32 = vector.broadcast %31 : vector<2x8x1xf32> to vector<2x8x8xf32>
    %33 = arith.subf %29, %32 : vector<2x8x8xf32>
    %34 = math.exp %33 : vector<2x8x8xf32>
    %cst_14 = arith.constant dense<0.000000e+00> : vector<2x8xf32>
    %35 = vector.multi_reduction <add>, %34, %cst_14 [2] : vector<2x8x8xf32> to vector<2x8xf32>
    %36 = vector.shape_cast %35 : vector<2x8xf32> to vector<2x8x1xf32>
    "tpu.trace_start"() <{level = 10 : i32, message = "bqk,bkd->bqd"}> : () -> ()
    %cst_15 = arith.constant dense<0.000000e+00> : vector<2x8x16xf32>
    %37 = tpu.matmul %34, %20, %cst_15 {dimension_numbers = #tpu.dot_dimension_numbers<[2], [1], [1], [2], [0, 0, 0, 1, 1, 2], [0], [0]>} : vector<2x8x8xf32>, vector<2x8x16xf32>, vector<2x8x16xf32> -> vector<2x8x16xf32>
    "tpu.trace_stop"() : () -> ()
    %38 = tpu.reciprocal %36 {approx = true} : vector<2x8x1xf32> -> vector<2x8x1xf32>
    %39 = vector.broadcast %38 : vector<2x8x1xf32> to vector<2x8x16xf32>
    %40 = arith.mulf %37, %39 : vector<2x8x16xf32>
    %41 = vector.shape_cast %40 : vector<2x8x16xf32> to vector<16x16xf32>
    %cst_16 = arith.constant dense<0.000000e+00> : vector<16x32xf32>
    %42 = tpu.matmul %41, %6, %cst_16 {dimension_numbers = #tpu.dot_dimension_numbers<[1], [0], [0], [1], [0, 0, 1, 1], [], []>} : vector<16x16xf32>, vector<16x32xf32>, vector<16x32xf32> -> vector<16x32xf32>
    %43 = arith.addf %14, %42 : vector<16x32xf32>
    %cst_17 = arith.constant 0.000000e+00 : f32
    %44 = vector.broadcast %cst_17 : f32 to vector<16x32xf32>
    %45 = arith.cmpf oge, %43, %44 : vector<16x32xf32>
    %cst_18 = arith.constant 0.00999999977 : f32
    %46 = vector.broadcast %cst_18 : f32 to vector<16x32xf32>
    %47 = arith.mulf %46, %43 : vector<16x32xf32>
    %48 = arith.select %45, %43, %47 : vector<16x32xi1>, vector<16x32xf32>
    %49 = vector.extract_strided_slice %8 {offsets = [0, 0, 0], sizes = [1, 32, 32], strides = [1, 1, 1]} : vector<3x32x32xf32> to vector<1x32x32xf32>
    %50 = vector.shape_cast %49 : vector<1x32x32xf32> to vector<32x32xf32>
    %cst_19 = arith.constant dense<0.000000e+00> : vector<16x32xf32>
    %51 = tpu.matmul %48, %50, %cst_19 {dimension_numbers = #tpu.dot_dimension_numbers<[1], [0], [0], [1], [0, 0, 1, 1], [], []>} : vector<16x32xf32>, vector<32x32xf32>, vector<16x32xf32> -> vector<16x32xf32>
    %52 = vector.extract_strided_slice %9 {offsets = [1, 0], sizes = [1, 32], strides = [1, 1]} : vector<4x80xf32> to vector<1x32xf32>
    %53 = vector.broadcast %52 : vector<1x32xf32> to vector<16x32xf32>
    %54 = arith.addf %51, %53 : vector<16x32xf32>
    %55 = arith.addf %2, %54 : vector<16x32xf32>
    %56 = vector.extract_strided_slice %8 {offsets = [1, 0, 0], sizes = [1, 32, 32], strides = [1, 1, 1]} : vector<3x32x32xf32> to vector<1x32x32xf32>
    %57 = vector.shape_cast %56 : vector<1x32x32xf32> to vector<32x32xf32>
    %cst_20 = arith.constant dense<0.000000e+00> : vector<16x32xf32>
    %58 = tpu.matmul %55, %57, %cst_20 {dimension_numbers = #tpu.dot_dimension_numbers<[1], [0], [0], [1], [0, 0, 1, 1], [], []>} : vector<16x32xf32>, vector<32x32xf32>, vector<16x32xf32> -> vector<16x32xf32>
    %59 = vector.extract_strided_slice %9 {offsets = [2, 0], sizes = [1, 32], strides = [1, 1]} : vector<4x80xf32> to vector<1x32xf32>
    %60 = vector.broadcast %59 : vector<1x32xf32> to vector<16x32xf32>
    %61 = arith.addf %58, %60 : vector<16x32xf32>
    %cst_21 = arith.constant 0.000000e+00 : f32
    %62 = vector.broadcast %cst_21 : f32 to vector<16x32xf32>
    %63 = arith.cmpf oge, %61, %62 : vector<16x32xf32>
    %cst_22 = arith.constant 0.00999999977 : f32
    %64 = vector.broadcast %cst_22 : f32 to vector<16x32xf32>
    %65 = arith.mulf %64, %61 : vector<16x32xf32>
    %66 = arith.select %63, %61, %65 : vector<16x32xi1>, vector<16x32xf32>
    %67 = vector.extract_strided_slice %8 {offsets = [2, 0, 0], sizes = [1, 32, 32], strides = [1, 1, 1]} : vector<3x32x32xf32> to vector<1x32x32xf32>
    %68 = vector.shape_cast %67 : vector<1x32x32xf32> to vector<32x32xf32>
    %cst_23 = arith.constant dense<0.000000e+00> : vector<16x32xf32>
    %69 = tpu.matmul %66, %68, %cst_23 {dimension_numbers = #tpu.dot_dimension_numbers<[1], [0], [0], [1], [0, 0, 1, 1], [], []>} : vector<16x32xf32>, vector<32x32xf32>, vector<16x32xf32> -> vector<16x32xf32>
    %70 = vector.extract_strided_slice %9 {offsets = [3, 0], sizes = [1, 32], strides = [1, 1]} : vector<4x80xf32> to vector<1x32xf32>
    %71 = vector.broadcast %70 : vector<1x32xf32> to vector<16x32xf32>
    %72 = arith.addf %69, %71 : vector<16x32xf32>
    %73 = vector.shape_cast %72 : vector<16x32xf32> to vector<2x8x32xf32>
    %c0_24 = arith.constant 0 : index
    %c0_25 = arith.constant 0 : index
    %c0_26 = arith.constant 0 : index
    %74 = vector.load %arg6[%c0_24, %c0_25, %c0_26] : memref<2x8x32xf32, #tpu.memory_space<vmem>>, vector<2x8x32xf32>
    tpu.vector_store %arg6[%c0_24, %c0_25, %c0_26], %73 {strides = array<i32>} : memref<2x8x32xf32, #tpu.memory_space<vmem>>, vector<2x8x32xf32>,
    return
  }
  func.func @transform_0(%arg0: i32) -> (i32, i32, i32) {
    %c0_i32 = arith.constant 0 : i32
    %c0_i32_0 = arith.constant 0 : i32
    %c0_i32_1 = arith.constant 0 : i32
    return %arg0, %c0_i32, %c0_i32_0 : i32, i32, i32
  }
  func.func @transform_1(%arg0: i32) -> (i32, i32) {
    %c0_i32 = arith.constant 0 : i32
    %c0_i32_0 = arith.constant 0 : i32
    %c0_i32_1 = arith.constant 0 : i32
    return %c0_i32, %c0_i32_0 : i32, i32
  }
  func.func @transform_2(%arg0: i32) -> (i32, i32) {
    %c0_i32 = arith.constant 0 : i32
    %c0_i32_0 = arith.constant 0 : i32
    %c0_i32_1 = arith.constant 0 : i32
    return %c0_i32, %c0_i32_0 : i32, i32
  }
  func.func @transform_3(%arg0: i32) -> (i32, i32, i32) {
    %c0_i32 = arith.constant 0 : i32
    %c0_i32_0 = arith.constant 0 : i32
    %c0_i32_1 = arith.constant 0 : i32
    %c0_i32_2 = arith.constant 0 : i32
    return %c0_i32, %c0_i32_0, %c0_i32_1 : i32, i32, i32
  }
  func.func @transform_4(%arg0: i32) -> (i32, i32) {
    %c0_i32 = arith.constant 0 : i32
    %c0_i32_0 = arith.constant 0 : i32
    %c0_i32_1 = arith.constant 0 : i32
    return %c0_i32, %c0_i32_0 : i32, i32
  }
  func.func @transform_5(%arg0: i32) -> (i32, i32, i32) {
    %c0_i32 = arith.constant 0 : i32
    %c0_i32_0 = arith.constant 0 : i32
    %c0_i32_1 = arith.constant 0 : i32
    return %arg0, %c0_i32, %c0_i32_0 : i32, i32, i32
  }
}

</mosaic_0001>

<llo_original>
// kernel: ray_transformer_block.1
$region0: #{ray_transformer_block.1}
  #allocation0 [shape = 'u32[]', space=smem, size = 0x4, offset = 0x4, fixed_abs, tag = 'smem constant byte address 0x4 - core index']
  #allocation1 [shape = 'u32[144,128]{1,0:T(1,128)}', space=vmem, size = 0x12000, scoped, tag = 'internal scratch']
  %s0 = inlined_call_operand.vmem [shape: bf16[2,8,32], index: 0, kind: input, shape index: {}]
  %s1 = inlined_call_operand.vmem [shape: bf16[32,80], index: 1, kind: input, shape index: {}]
  %s2 = inlined_call_operand.vmem [shape: bf16[16,32], index: 2, kind: input, shape index: {}]
  %s3 = inlined_call_operand.hbm [shape: bf16[3,32,32], index: 3, kind: input, shape index: {}]
  %s4 = inlined_call_operand.vmem [shape: f32[4,80], index: 4, kind: input, shape index: {}]
  %s5 = inlined_call_operand.hbm [shape: f32[2,8,32], index: 5, kind: output, shape index: {}]
  %s6 = sld [smem:[#allocation0]]
  $region34: #{ray_transformer_block.1} parent=0
    _
  %s8 = ssub.s32 1, %s6
  %s9 = scalar_select 0, %s8, %s6
  $region1: #{ray_transformer_block.1} parent=0
    #allocation2 [shape = 'u8[24576]{0}', space=vmem, size = 0x6000, scoped, tag = 'input window, operand 3, single buffered']
    #allocation3 [shape = 's32[1]{0}', space=sflag, size = 0x4, scoped, tag = 'scoped memory for ray_transformer_block.1']
    #allocation4 [shape = 's32[1]{0}', space=sflag, size = 0x4, scoped, tag = 'scoped memory for ray_transformer_block.1']
    #allocation5 [shape = 'u8[8192]{0}', space=vmem, size = 0x2000, scoped, tag = 'output window, operand 0, single buffered']
    %10 = vsyncpa [#allocation3], 0
    %11 = vsyncpa [#allocation4], 0
    // Predicated region
    $region2: #{ray_transformer_block.1} parent=1 // pred_check
      _
    $region3: #{ray_transformer_block.1} parent=1 // pred_check_branch
      %13 = sbr.rel (0) target = $region5
    $region4: #{ray_transformer_block.1} parent=1 // pred_region
      _
    $region5: #{ray_transformer_block.1} parent=1 // pred_fallthru
      _
    // Predicated region
    $region6: #{ray_transformer_block.1} parent=1 // pred_check
      _
    $region7: #{ray_transformer_block.1} parent=1 // pred_check_branch
      %15 = sbr.rel (0) target = $region9
    $region8: #{ray_transformer_block.1} parent=1 // pred_region
      _
    $region9: #{ray_transformer_block.1} parent=1 // pred_fallthru
      _
    // Predicated region
    $region10: #{ray_transformer_block.1} parent=1 // pred_check
      _
    $region11: #{ray_transformer_block.1} parent=1 // pred_check_branch
      %17 = sbr.rel (0) target = $region13
    $region12: #{ray_transformer_block.1} parent=1 // pred_region
      _
    $region13: #{ray_transformer_block.1} parent=1 // pred_fallthru
      _
    // Predicated region
    $region14: #{ray_transformer_block.1} parent=1 // pred_check
      _
    $region15: #{ray_transformer_block.1} parent=1 // pred_check_branch
      %19 = sbr.rel (0) target = $region17
    $region16: #{ray_transformer_block.1} parent=1 // pred_region
      %s21 = ssub.s32 768, 768
      %22 = vsyncadd [#allocation3], %s21
      %s23 = sshll.u32 [#allocation2], 4
      %s24 = int_to_ptr.vmem [resolvable:$true] %s23
      %29 = dma.hbm_to_vmem [thread:$0]  %s3, 768, %s24, [#allocation3], 64, 64, 4
    $region17: #{ray_transformer_block.1} parent=1 // pred_fallthru
      _
    // Predicated region
    $region18: #{ray_transformer_block.1} parent=1 // pred_check
      _
    $region19: #{ray_transformer_block.1} parent=1 // pred_check_branch
      %31 = sbr.rel (0) target = $region21
    $region20: #{ray_transformer_block.1} parent=1 // pred_region
      _
    $region21: #{ray_transformer_block.1} parent=1 // pred_fallthru
      _
    // Predicated region
    $region22: #{ray_transformer_block.1} parent=1 // pred_check
      _
    $region23: #{ray_transformer_block.1} parent=1 // pred_check_branch
      %33 = sbr.rel (0) target = $region25
    $region24: #{ray_transformer_block.1} parent=1 // pred_region
      %34 = dma.done [#allocation3], 768
    $region25: #{ray_transformer_block.1} parent=1 // pred_fallthru
      _
    %v35 = vld [vmem:[%s0] sm:$0xf]
    %v36 = vld [vmem:[%s0 + $0x4] sm:$0xf]
    %v37 = vunpack.c.l.bf16 %v35
    %v38 = vunpack.c.l.bf16 %v36
    %v39 = vld [vmem:[%s1] sm:$0xf]
    %v40 = vld [vmem:[%s1 + $0x4] sm:$0xf]
    %v41 = vld [vmem:[%s1 + $0x8] sm:$0xf]
    %v42 = vld [vmem:[%s1 + $0xc] sm:$0xf]
    %v43 = vunpack.c.l.bf16 %v39
    %v44 = vunpack.c.l.bf16 %v40
    %v45 = vunpack.c.l.bf16 %v41
    %v46 = vunpack.c.l.bf16 %v42
    %v47 = vld [vmem:[%s2] sm:$0xf]
    %v48 = vld [vmem:[%s2 + $0x4] sm:$0xf]
    %v49 = vunpack.c.l.bf16 %v47
    %v50 = vunpack.c.l.bf16 %v48
    %v51 = vld [vmem:[#allocation2] sm:$0xf]
    %v52 = vld [vmem:[#allocation2 + $0x4] sm:$0xf]
    %v53 = vld [vmem:[#allocation2 + $0x8] sm:$0xf]
    %v54 = vld [vmem:[#allocation2 + $0xc] sm:$0xf]
    %v55 = vld [vmem:[#allocation2 + $0x10] sm:$0xf]
    %v56 = vld [vmem:[#allocation2 + $0x14] sm:$0xf]
    %v57 = vld [vmem:[#allocation2 + $0x18] sm:$0xf]
    %v58 = vld [vmem:[#allocation2 + $0x1c] sm:$0xf]
    %v59 = vld [vmem:[#allocation2 + $0x20] sm:$0xf]
    %v60 = vld [vmem:[#allocation2 + $0x24] sm:$0xf]
    %v61 = vld [vmem:[#allocation2 + $0x28] sm:$0xf]
    %v62 = vld [vmem:[#allocation2 + $0x2c] sm:$0xf]
    %v63 = vunpack.c.l.bf16 %v51
    %v64 = vunpack.c.l.bf16 %v52
    %v65 = vunpack.c.l.bf16 %v53
    %v66 = vunpack.c.l.bf16 %v54
    %v67 = vunpack.c.l.bf16 %v55
    %v68 = vunpack.c.l.bf16 %v56
    %v69 = vunpack.c.l.bf16 %v57
    %v70 = vunpack.c.l.bf16 %v58
    %v71 = vunpack.c.l.bf16 %v59
    %v72 = vunpack.c.l.bf16 %v60
    %v73 = vunpack.c.l.bf16 %v61
    %v74 = vunpack.c.l.bf16 %v62
    %v75 = vld [vmem:[%s4] sm:$0xf]
    %v76 = vlaneseq
    %v77 = vshrl.u32 %v76, 7
    %v78 = vsub.s32 0, %v77
    %v79 = vrot.slane %v75, %v78
    %vm80 = vcmask 261120
    %v82 = vsel %vm80, %v37, 0
    %v85 = vsel %vm80, %v38, 0
    %87 = vmatprep.subr.mxu0 0.0
    %88 = vmatpush1.msra.mxu0 %v43
    %89 = vmatprep.subr.mxu0 0.0
    %90 = vmatpush1.msra.mxu0 %v44
    %91 = vmatprep.subr.mxu0 0.0
    %92 = vmatpush1.msra.mxu0 %v45
    %93 = vmatprep.subr.mxu0 0.0
    %94 = vmatpush1.msra.mxu0 %v46
    %95 = vmatprep.subr.mxu0 0.0
    %96 = vmatpush1.msra.mxu0 0.0
    %97 = vmatprep.subr.mxu0 0.0
    %98 = vmatpush1.msra.mxu0 0.0
    %99 = vmatprep.subr.mxu0 0.0
    %100 = vmatpush1.msra.mxu0 0.0
    %101 = vmatprep.subr.mxu0 0.0
    %102 = vmatpush1.msra.mxu0 0.0
    %103 = vmatprep.subr.mxu0 0.0
    %104 = vmatpush1.msra.mxu0 0.0
    %105 = vmatprep.subr.mxu0 0.0
    %106 = vmatpush1.msra.mxu0 0.0
    %107 = vmatprep.subr.mxu0 0.0
    %108 = vmatpush1.msra.mxu0 0.0
    %109 = vmatprep.subr.mxu0 0.0
    %110 = vmatpush1.msra.mxu0 0.0
    %111 = vmatprep.subr.mxu0 0.0
    %112 = vmatpush1.msra.mxu0 0.0
    %113 = vmatprep.subr.mxu0 0.0
    %114 = vmatpush1.msra.mxu0 0.0
    %115 = vmatprep.subr.mxu0 0.0
    %116 = vmatpush1.msra.mxu0 0.0
    %117 = vmatprep.subr.mxu0 0.0
    %118 = vmatpush1.msra.mxu0 0.0
    %119 = vmatprep.subr.mxu0 0.0
    %120 = vmatpush1.msra.mxu0 0.0
    %121 = vmatprep.subr.mxu0 0.0
    %122 = vmatpush1.msra.mxu0 0.0
    %123 = vmatprep.subr.mxu0 0.0
    %124 = vmatpush1.msra.mxu0 0.0
    %125 = vmatprep.subr.mxu0 0.0
    %126 = vmatpush1.msra.mxu0 0.0
    %127 = vmatprep.subr.mxu0 0.0
    %128 = vmatpush1.msra.mxu0 0.0
    %129 = vmatprep.subr.mxu0 0.0
    %130 = vmatpush1.msra.mxu0 0.0
    %131 = vmatprep.subr.mxu0 0.0
    %132 = vmatpush1.msra.mxu0 0.0
    %133 = vmatprep.subr.mxu0 0.0
    %134 = vmatpush1.msra.mxu0 0.0
    %135 = vmatprep.subr.mxu0 0.0
    %136 = vmatpush1.msra.mxu0 0.0
    %137 = vmatprep.subr.mxu0 0.0
    %138 = vmatpush1.msra.mxu0 0.0
    %139 = vmatprep.subr.mxu0 0.0
    %140 = vmatpush1.msra.mxu0 0.0
    %141 = vmatprep.subr.mxu0 0.0
    %142 = vmatpush1.msra.mxu0 0.0
    %143 = vmatprep.subr.mxu0 0.0
    %144 = vmatpush1.msra.mxu0 0.0
    %145 = vmatprep.subr.mxu0 0.0
    %146 = vmatpush1.msra.mxu0 0.0
    %147 = vmatprep.subr.mxu0 0.0
    %148 = vmatpush1.msra.mxu0 0.0
    %149 = vmatprep.subr.mxu0 0.0
    %150 = vmatpush1.msra.mxu0 0.0
    %151 = vmatprep.mubr.f32.mxu0 0.0
    %152 = vmatmul.mubr.f32.gmra.mrb[0].mxu0 %v82
    %v153 = vpop.f32.mrb[0].mxu0
    %v154 = vadd.f32 %v79, %v153
    %v155 = vpop.f32.mrb[0].mxu0
    %156 = vmatprep.mubr.f32.mxu0 0.0
    %157 = vmatmul.mubr.f32.gmra.mrb[0].mxu0 %v85
    %v158 = vpop.f32.mrb[0].mxu0
    %v159 = vadd.f32 %v79, %v158
    %v160 = vpop.f32.mrb[0].mxu0
    %161 = vdwg.mxu0
    %163 = vrot.lane.b32.xlu0 %v154, 96
    %v164 = vpop.permute.xlu0 %163
    %165 = vrot.lane.b32.xlu0 %v154, 80
    %v166 = vpop.permute.xlu0 %165
    %vm167 = vcmask 130048
    %v168 = vsel %vm167, %v164, 0
    %v170 = vsel %vm167, %v166, 0
    %172 = vmatprep.subr.mxu0 0.0
    %173 = vmatpush1.xpose.msra.mxu0 %v170
    %174 = vmatprep.subr.mxu0 0.0
    %175 = vmatpush1.xpose.msra.mxu0 0.0
    %176 = vmatprep.subr.mxu0 0.0
    %177 = vmatpush1.xpose.msra.mxu0 0.0
    %178 = vmatprep.subr.mxu0 0.0
    %179 = vmatpush1.xpose.msra.mxu0 0.0
    %180 = vmatprep.subr.mxu0 0.0
    %181 = vmatpush1.xpose.msra.mxu0 0.0
    %182 = vmatprep.subr.mxu0 0.0
    %183 = vmatpush1.xpose.msra.mxu0 0.0
    %184 = vmatprep.subr.mxu0 0.0
    %185 = vmatpush1.xpose.msra.mxu0 0.0
    %186 = vmatprep.subr.mxu0 0.0
    %187 = vmatpush1.xpose.msra.mxu0 0.0
    %188 = vmatprep.subr.mxu0 0.0
    %189 = vmatpush1.xpose.msra.mxu0 0.0
    %190 = vmatprep.subr.mxu0 0.0
    %191 = vmatpush1.xpose.msra.mxu0 0.0
    %192 = vmatprep.subr.mxu0 0.0
    %193 = vmatpush1.xpose.msra.mxu0 0.0
    %194 = vmatprep.subr.mxu0 0.0
    %195 = vmatpush1.xpose.msra.mxu0 0.0
    %196 = vmatprep.subr.mxu0 0.0
    %197 = vmatpush1.xpose.msra.mxu0 0.0
    %198 = vmatprep.subr.mxu0 0.0
    %199 = vmatpush1.xpose.msra.mxu0 0.0
    %200 = vmatprep.subr.mxu0 0.0
    %201 = vmatpush1.xpose.msra.mxu0 0.0
    %202 = vmatprep.subr.mxu0 0.0
    %203 = vmatpush1.xpose.msra.mxu0 0.0
    %204 = vmatprep.subr.mxu0 0.0
    %205 = vmatpush1.xpose.msra.mxu0 0.0
    %206 = vmatprep.subr.mxu0 0.0
    %207 = vmatpush1.xpose.msra.mxu0 0.0
    %208 = vmatprep.subr.mxu0 0.0
    %209 = vmatpush1.xpose.msra.mxu0 0.0
    %210 = vmatprep.subr.mxu0 0.0
    %211 = vmatpush1.xpose.msra.mxu0 0.0
    %212 = vmatprep.subr.mxu0 0.0
    %213 = vmatpush1.xpose.msra.mxu0 0.0
    %214 = vmatprep.subr.mxu0 0.0
    %215 = vmatpush1.xpose.msra.mxu0 0.0
    %216 = vmatprep.subr.mxu0 0.0
    %217 = vmatpush1.xpose.msra.mxu0 0.0
    %218 = vmatprep.subr.mxu0 0.0
    %219 = vmatpush1.xpose.msra.mxu0 0.0
    %220 = vmatprep.subr.mxu0 0.0
    %221 = vmatpush1.xpose.msra.mxu0 0.0
    %222 = vmatprep.subr.mxu0 0.0
    %223 = vmatpush1.xpose.msra.mxu0 0.0
    %224 = vmatprep.subr.mxu0 0.0
    %225 = vmatpush1.xpose.msra.mxu0 0.0
    %226 = vmatprep.subr.mxu0 0.0
    %227 = vmatpush1.xpose.msra.mxu0 0.0
    %228 = vmatprep.subr.mxu0 0.0
    %229 = vmatpush1.xpose.msra.mxu0 0.0
    %230 = vmatprep.subr.mxu0 0.0
    %231 = vmatpush1.xpose.msra.mxu0 0.0
    %232 = vmatprep.subr.mxu0 0.0
    %233 = vmatpush1.xpose.msra.mxu0 0.0
    %234 = vmatprep.subr.mxu0 0.0
    %235 = vmatpush1.xpose.msra.mxu0 0.0
    %236 = vmatprep.mubr.f32.mxu0 0.0
    %237 = vmatmul.mubr.f32.gmra.mrb[0].mxu0 %v168
    %v238 = vpop.f32.mrb[0].mxu0
    %v239 = vadd.f32 0.0, %v238
    %v240 = vpop.f32.mrb[0].mxu0
    %241 = vdwg.mxu0
    %243 = vrot.lane.b32.xlu0 %v159, 96
    %v244 = vpop.permute.xlu0 %243
    %245 = vrot.lane.b32.xlu0 %v159, 80
    %v246 = vpop.permute.xlu0 %245
    %v247 = vsel %vm167, %v244, 0
    %v249 = vsel %vm167, %v246, 0
    %251 = vmatprep.subr.mxu0 0.0
    %252 = vmatpush1.xpose.msra.mxu0 %v249
    %253 = vmatprep.subr.mxu0 0.0
    %254 = vmatpush1.xpose.msra.mxu0 0.0
    %255 = vmatprep.subr.mxu0 0.0
    %256 = vmatpush1.xpose.msra.mxu0 0.0
    %257 = vmatprep.subr.mxu0 0.0
    %258 = vmatpush1.xpose.msra.mxu0 0.0
    %259 = vmatprep.subr.mxu0 0.0
    %260 = vmatpush1.xpose.msra.mxu0 0.0
    %261 = vmatprep.subr.mxu0 0.0
    %262 = vmatpush1.xpose.msra.mxu0 0.0
    %263 = vmatprep.subr.mxu0 0.0
    %264 = vmatpush1.xpose.msra.mxu0 0.0
    %265 = vmatprep.subr.mxu0 0.0
    %266 = vmatpush1.xpose.msra.mxu0 0.0
    %267 = vmatprep.subr.mxu0 0.0
    %268 = vmatpush1.xpose.msra.mxu0 0.0
    %269 = vmatprep.subr.mxu0 0.0
    %270 = vmatpush1.xpose.msra.mxu0 0.0
    %271 = vmatprep.subr.mxu0 0.0
    %272 = vmatpush1.xpose.msra.mxu0 0.0
    %273 = vmatprep.subr.mxu0 0.0
    %274 = vmatpush1.xpose.msra.mxu0 0.0
    %275 = vmatprep.subr.mxu0 0.0
    %276 = vmatpush1.xpose.msra.mxu0 0.0
    %277 = vmatprep.subr.mxu0 0.0
    %278 = vmatpush1.xpose.msra.mxu0 0.0
    %279 = vmatprep.subr.mxu0 0.0
    %280 = vmatpush1.xpose.msra.mxu0 0.0
    %281 = vmatprep.subr.mxu0 0.0
    %282 = vmatpush1.xpose.msra.mxu0 0.0
    %283 = vmatprep.subr.mxu0 0.0
    %284 = vmatpush1.xpose.msra.mxu0 0.0
    %285 = vmatprep.subr.mxu0 0.0
    %286 = vmatpush1.xpose.msra.mxu0 0.0
    %287 = vmatprep.subr.mxu0 0.0
    %288 = vmatpush1.xpose.msra.mxu0 0.0
    %289 = vmatprep.subr.mxu0 0.0
    %290 = vmatpush1.xpose.msra.mxu0 0.0
    %291 = vmatprep.subr.mxu0 0.0
    %292 = vmatpush1.xpose.msra.mxu0 0.0
    %293 = vmatprep.subr.mxu0 0.0
    %294 = vmatpush1.xpose.msra.mxu0 0.0
    %295 = vmatprep.subr.mxu0 0.0
    %296 = vmatpush1.xpose.msra.mxu0 0.0
    %297 = vmatprep.subr.mxu0 0.0
    %298 = vmatpush1.xpose.msra.mxu0 0.0
    %299 = vmatprep.subr.mxu0 0.0
    %300 = vmatpush1.xpose.msra.mxu0 0.0
    %301 = vmatprep.subr.mxu0 0.0
    %302 = vmatpush1.xpose.msra.mxu0 0.0
    %303 = vmatprep.subr.mxu0 0.0
    %304 = vmatpush1.xpose.msra.mxu0 0.0
    %305 = vmatprep.subr.mxu0 0.0
    %306 = vmatpush1.xpose.msra.mxu0 0.0
    %307 = vmatprep.subr.mxu0 0.0
    %308 = vmatpush1.xpose.msra.mxu0 0.0
    %309 = vmatprep.subr.mxu0 0.0
    %310 = vmatpush1.xpose.msra.mxu0 0.0
    %311 = vmatprep.subr.mxu0 0.0
    %312 = vmatpush1.xpose.msra.mxu0 0.0
    %313 = vmatprep.subr.mxu0 0.0
    %314 = vmatpush1.xpose.msra.mxu0 0.0
    %315 = vmatprep.mubr.f32.mxu0 0.0
    %316 = vmatmul.mubr.f32.gmra.mrb[0].mxu0 %v247
    %v317 = vpop.f32.mrb[0].mxu0
    %v318 = vadd.f32 0.0, %v317
    %v319 = vpop.f32.mrb[0].mxu0
    %320 = vdwg.mxu0
    %v321 = vlaneseq
    %v322 = vshrl.u32 %v321, 7
    %v323 = vlaneseq
    %v324 = vand.u32 %v323, 127
    %vm325 = vcmp.eq.s32.totalorder %v322, %v324
    %v326 = vsel %vm325, 1, 0
    %vm327 = vcmp.eq.s32.totalorder %v326, 1
    %v328 = vsel %vm327, -1e+30, %v239
    %v329 = vsel %vm327, -1e+30, %v318
    %vm330 = vcmask 64512
    %v331 = vsel %vm330, %v328, -inf
    %332 = vmax.xlane.f32.xlu0 %v331
    %v333 = vpop.xlane.xlu0 %332
    %v334 = vsel %vm330, %v329, -inf
    %335 = vmax.xlane.f32.xlu0 %v334
    %v336 = vpop.xlane.xlu0 %335
    %v337 = vsub.f32 %v328, %v333
    %v338 = vsub.f32 %v329, %v336
    %v339 = vmul.f32 %v337, 1.442695
    %v340 = vpow.pop %v339
    %v341 = vmul.f32 %v338, 1.442695
    %v342 = vpow.pop %v341
    %v343 = vsel %vm330, %v340, 0.0
    %344 = vadd.xlane.f32.xlu0 %v343
    %v345 = vpop.xlane.xlu0 %344
    %v346 = vsel %vm330, %v342, 0.0
    %347 = vadd.xlane.f32.xlu0 %v346
    %v348 = vpop.xlane.xlu0 %347
    %349 = vrot.lane.b32.xlu0 %v154, 64
    %v350 = vpop.permute.xlu0 %349
    %v353 = vsel %vm330, %v340, 0
    %355 = vmatprep.subr.mxu0 0.0
    %356 = vmatpush1.msra.mxu0 %v350
    %357 = vmatprep.subr.mxu0 0.0
    %358 = vmatpush1.msra.mxu0 0.0
    %359 = vmatprep.subr.mxu0 0.0
    %360 = vmatpush1.msra.mxu0 0.0
    %361 = vmatprep.subr.mxu0 0.0
    %362 = vmatpush1.msra.mxu0 0.0
    %363 = vmatprep.subr.mxu0 0.0
    %364 = vmatpush1.msra.mxu0 0.0
    %365 = vmatprep.subr.mxu0 0.0
    %366 = vmatpush1.msra.mxu0 0.0
    %367 = vmatprep.subr.mxu0 0.0
    %368 = vmatpush1.msra.mxu0 0.0
    %369 = vmatprep.subr.mxu0 0.0
    %370 = vmatpush1.msra.mxu0 0.0
    %371 = vmatprep.subr.mxu0 0.0
    %372 = vmatpush1.msra.mxu0 0.0
    %373 = vmatprep.subr.mxu0 0.0
    %374 = vmatpush1.msra.mxu0 0.0
    %375 = vmatprep.subr.mxu0 0.0
    %376 = vmatpush1.msra.mxu0 0.0
    %377 = vmatprep.subr.mxu0 0.0
    %378 = vmatpush1.msra.mxu0 0.0
    %379 = vmatprep.subr.mxu0 0.0
    %380 = vmatpush1.msra.mxu0 0.0
    %381 = vmatprep.subr.mxu0 0.0
    %382 = vmatpush1.msra.mxu0 0.0
    %383 = vmatprep.subr.mxu0 0.0
    %384 = vmatpush1.msra.mxu0 0.0
    %385 = vmatprep.subr.mxu0 0.0
    %386 = vmatpush1.msra.mxu0 0.0
    %387 = vmatprep.subr.mxu0 0.0
    %388 = vmatpush1.msra.mxu0 0.0
    %389 = vmatprep.subr.mxu0 0.0
    %390 = vmatpush1.msra.mxu0 0.0
    %391 = vmatprep.subr.mxu0 0.0
    %392 = vmatpush1.msra.mxu0 0.0
    %393 = vmatprep.subr.mxu0 0.0
    %394 = vmatpush1.msra.mxu0 0.0
    %395 = vmatprep.subr.mxu0 0.0
    %396 = vmatpush1.msra.mxu0 0.0
    %397 = vmatprep.subr.mxu0 0.0
    %398 = vmatpush1.msra.mxu0 0.0
    %399 = vmatprep.subr.mxu0 0.0
    %400 = vmatpush1.msra.mxu0 0.0
    %401 = vmatprep.subr.mxu0 0.0
    %402 = vmatpush1.msra.mxu0 0.0
    %403 = vmatprep.subr.mxu0 0.0
    %404 = vmatpush1.msra.mxu0 0.0
    %405 = vmatprep.subr.mxu0 0.0
    %406 = vmatpush1.msra.mxu0 0.0
    %407 = vmatprep.subr.mxu0 0.0
    %408 = vmatpush1.msra.mxu0 0.0
    %409 = vmatprep.subr.mxu0 0.0
    %410 = vmatpush1.msra.mxu0 0.0
    %411 = vmatprep.subr.mxu0 0.0
    %412 = vmatpush1.msra.mxu0 0.0
    %413 = vmatprep.subr.mxu0 0.0
    %414 = vmatpush1.msra.mxu0 0.0
    %415 = vmatprep.subr.mxu0 0.0
    %416 = vmatpush1.msra.mxu0 0.0
    %417 = vmatprep.subr.mxu0 0.0
    %418 = vmatpush1.msra.mxu0 0.0
    %419 = vmatprep.mubr.f32.mxu0 0.0
    %420 = vmatmul.mubr.f32.gmra.mrb[0].mxu0 %v353
    %v421 = vpop.f32.mrb[0].mxu0
    %v422 = vadd.f32 0.0, %v421
    %v423 = vpop.f32.mrb[0].mxu0
    %424 = vdwg.mxu0
    %425 = vrot.lane.b32.xlu0 %v159, 64
    %v426 = vpop.permute.xlu0 %425
    %v429 = vsel %vm330, %v342, 0
    %431 = vmatprep.subr.mxu0 0.0
    %432 = vmatpush1.msra.mxu0 %v426
    %433 = vmatprep.subr.mxu0 0.0
    %434 = vmatpush1.msra.mxu0 0.0
    %435 = vmatprep.subr.mxu0 0.0
    %436 = vmatpush1.msra.mxu0 0.0
    %437 = vmatprep.subr.mxu0 0.0
    %438 = vmatpush1.msra.mxu0 0.0
    %439 = vmatprep.subr.mxu0 0.0
    %440 = vmatpush1.msra.mxu0 0.0
    %441 = vmatprep.subr.mxu0 0.0
    %442 = vmatpush1.msra.mxu0 0.0
    %443 = vmatprep.subr.mxu0 0.0
    %444 = vmatpush1.msra.mxu0 0.0
    %445 = vmatprep.subr.mxu0 0.0
    %446 = vmatpush1.msra.mxu0 0.0
    %447 = vmatprep.subr.mxu0 0.0
    %448 = vmatpush1.msra.mxu0 0.0
    %449 = vmatprep.subr.mxu0 0.0
    %450 = vmatpush1.msra.mxu0 0.0
    %451 = vmatprep.subr.mxu0 0.0
    %452 = vmatpush1.msra.mxu0 0.0
    %453 = vmatprep.subr.mxu0 0.0
    %454 = vmatpush1.msra.mxu0 0.0
    %455 = vmatprep.subr.mxu0 0.0
    %456 = vmatpush1.msra.mxu0 0.0
    %457 = vmatprep.subr.mxu0 0.0
    %458 = vmatpush1.msra.mxu0 0.0
    %459 = vmatprep.subr.mxu0 0.0
    %460 = vmatpush1.msra.mxu0 0.0
    %461 = vmatprep.subr.mxu0 0.0
    %462 = vmatpush1.msra.mxu0 0.0
    %463 = vmatprep.subr.mxu0 0.0
    %464 = vmatpush1.msra.mxu0 0.0
    %465 = vmatprep.subr.mxu0 0.0
    %466 = vmatpush1.msra.mxu0 0.0
    %467 = vmatprep.subr.mxu0 0.0
    %468 = vmatpush1.msra.mxu0 0.0
    %469 = vmatprep.subr.mxu0 0.0
    %470 = vmatpush1.msra.mxu0 0.0
    %471 = vmatprep.subr.mxu0 0.0
    %472 = vmatpush1.msra.mxu0 0.0
    %473 = vmatprep.subr.mxu0 0.0
    %474 = vmatpush1.msra.mxu0 0.0
    %475 = vmatprep.subr.mxu0 0.0
    %476 = vmatpush1.msra.mxu0 0.0
    %477 = vmatprep.subr.mxu0 0.0
    %478 = vmatpush1.msra.mxu0 0.0
    %479 = vmatprep.subr.mxu0 0.0
    %480 = vmatpush1.msra.mxu0 0.0
    %481 = vmatprep.subr.mxu0 0.0
    %482 = vmatpush1.msra.mxu0 0.0
    %483 = vmatprep.subr.mxu0 0.0
    %484 = vmatpush1.msra.mxu0 0.0
    %485 = vmatprep.subr.mxu0 0.0
    %486 = vmatpush1.msra.mxu0 0.0
    %487 = vmatprep.subr.mxu0 0.0
    %488 = vmatpush1.msra.mxu0 0.0
    %489 = vmatprep.subr.mxu0 0.0
    %490 = vmatpush1.msra.mxu0 0.0
    %491 = vmatprep.subr.mxu0 0.0
    %492 = vmatpush1.msra.mxu0 0.0
    %493 = vmatprep.subr.mxu0 0.0
    %494 = vmatpush1.msra.mxu0 0.0
    %495 = vmatprep.mubr.f32.mxu0 0.0
    %496 = vmatmul.mubr.f32.gmra.mrb[0].mxu0 %v429
    %v497 = vpop.f32.mrb[0].mxu0
    %v498 = vadd.f32 0.0, %v497
    %v499 = vpop.f32.mrb[0].mxu0
    %500 = vdwg.mxu0
    %v501 = vrcp.pop %v345
    %v502 = vrcp.pop %v348
    %v503 = vmul.f32 %v422, %v501
    %v504 = vmul.f32 %v498, %v502
    %v506 = vsel %vm167, %v503, 0
    %v509 = vsel %vm167, %v504, 0
    %511 = vmatprep.subr.mxu0 0.0
    %512 = vmatpush1.msra.mxu0 %v49
    %513 = vmatprep.subr.mxu0 0.0
    %514 = vmatpush1.msra.mxu0 %v50
    %515 = vmatprep.subr.mxu0 0.0
    %516 = vmatpush1.msra.mxu0 0.0
    %517 = vmatprep.subr.mxu0 0.0
    %518 = vmatpush1.msra.mxu0 0.0
    %519 = vmatprep.subr.mxu0 0.0
    %520 = vmatpush1.msra.mxu0 0.0
    %521 = vmatprep.subr.mxu0 0.0
    %522 = vmatpush1.msra.mxu0 0.0
    %523 = vmatprep.subr.mxu0 0.0
    %524 = vmatpush1.msra.mxu0 0.0
    %525 = vmatprep.subr.mxu0 0.0
    %526 = vmatpush1.msra.mxu0 0.0
    %527 = vmatprep.subr.mxu0 0.0
    %528 = vmatpush1.msra.mxu0 0.0
    %529 = vmatprep.subr.mxu0 0.0
    %530 = vmatpush1.msra.mxu0 0.0
    %531 = vmatprep.subr.mxu0 0.0
    %532 = vmatpush1.msra.mxu0 0.0
    %533 = vmatprep.subr.mxu0 0.0
    %534 = vmatpush1.msra.mxu0 0.0
    %535 = vmatprep.subr.mxu0 0.0
    %536 = vmatpush1.msra.mxu0 0.0
    %537 = vmatprep.subr.mxu0 0.0
    %538 = vmatpush1.msra.mxu0 0.0
    %539 = vmatprep.subr.mxu0 0.0
    %540 = vmatpush1.msra.mxu0 0.0
    %541 = vmatprep.subr.mxu0 0.0
    %542 = vmatpush1.msra.mxu0 0.0
    %543 = vmatprep.subr.mxu0 0.0
    %544 = vmatpush1.msra.mxu0 0.0
    %545 = vmatprep.subr.mxu0 0.0
    %546 = vmatpush1.msra.mxu0 0.0
    %547 = vmatprep.subr.mxu0 0.0
    %548 = vmatpush1.msra.mxu0 0.0
    %549 = vmatprep.subr.mxu0 0.0
    %550 = vmatpush1.msra.mxu0 0.0
    %551 = vmatprep.subr.mxu0 0.0
    %552 = vmatpush1.msra.mxu0 0.0
    %553 = vmatprep.subr.mxu0 0.0
    %554 = vmatpush1.msra.mxu0 0.0
    %555 = vmatprep.subr.mxu0 0.0
    %556 = vmatpush1.msra.mxu0 0.0
    %557 = vmatprep.subr.mxu0 0.0
    %558 = vmatpush1.msra.mxu0 0.0
    %559 = vmatprep.subr.mxu0 0.0
    %560 = vmatpush1.msra.mxu0 0.0
    %561 = vmatprep.subr.mxu0 0.0
    %562 = vmatpush1.msra.mxu0 0.0
    %563 = vmatprep.subr.mxu0 0.0
    %564 = vmatpush1.msra.mxu0 0.0
    %565 = vmatprep.subr.mxu0 0.0
    %566 = vmatpush1.msra.mxu0 0.0
    %567 = vmatprep.subr.mxu0 0.0
    %568 = vmatpush1.msra.mxu0 0.0
    %569 = vmatprep.subr.mxu0 0.0
    %570 = vmatpush1.msra.mxu0 0.0
    %571 = vmatprep.subr.mxu0 0.0
    %572 = vmatpush1.msra.mxu0 0.0
    %573 = vmatprep.subr.mxu0 0.0
    %574 = vmatpush1.msra.mxu0 0.0
    %575 = vmatprep.mubr.f32.mxu0 0.0
    %576 = vmatmul.mubr.f32.gmra.mrb[0].mxu0 %v506
    %v577 = vpop.f32.mrb[0].mxu0
    %v578 = vadd.f32 0.0, %v577
    %v579 = vpop.f32.mrb[0].mxu0
    %580 = vmatprep.mubr.f32.mxu0 0.0
    %581 = vmatmul.mubr.f32.gmra.mrb[0].mxu0 %v509
    %v582 = vpop.f32.mrb[0].mxu0
    %v583 = vadd.f32 0.0, %v582
    %v584 = vpop.f32.mrb[0].mxu0
    %585 = vdwg.mxu0
    %v586 = vadd.f32 %v154, %v578
    %v587 = vadd.f32 %v159, %v583
    %vm588 = vcmp.ge.f32.partialorder %v586, 0.0
    %vm589 = vcmp.ge.f32.partialorder %v587, 0.0
    %v590 = vmul.f32 %v586, 0.01
    %v591 = vmul.f32 %v587, 0.01
    %v592 = vsel %vm588, %v586, %v590
    %v593 = vsel %vm589, %v587, %v591
    %v594 = vlaneseq
    %v595 = vshrl.u32 %v594, 7
    %v596 = vsub.s32 1, %v595
    %v597 = vrot.slane %v75, %v596
    %v599 = vsel %vm80, %v592, 0
    %v602 = vsel %vm80, %v593, 0
    %604 = vmatprep.subr.mxu0 0.0
    %605 = vmatpush1.msra.mxu0 %v63
    %606 = vmatprep.subr.mxu0 0.0
    %607 = vmatpush1.msra.mxu0 %v64
    %608 = vmatprep.subr.mxu0 0.0
    %609 = vmatpush1.msra.mxu0 %v65
    %610 = vmatprep.subr.mxu0 0.0
    %611 = vmatpush1.msra.mxu0 %v66
    %612 = vmatprep.subr.mxu0 0.0
    %613 = vmatpush1.msra.mxu0 0.0
    %614 = vmatprep.subr.mxu0 0.0
    %615 = vmatpush1.msra.mxu0 0.0
    %616 = vmatprep.subr.mxu0 0.0
    %617 = vmatpush1.msra.mxu0 0.0
    %618 = vmatprep.subr.mxu0 0.0
    %619 = vmatpush1.msra.mxu0 0.0
    %620 = vmatprep.subr.mxu0 0.0
    %621 = vmatpush1.msra.mxu0 0.0
    %622 = vmatprep.subr.mxu0 0.0
    %623 = vmatpush1.msra.mxu0 0.0
    %624 = vmatprep.subr.mxu0 0.0
    %625 = vmatpush1.msra.mxu0 0.0
    %626 = vmatprep.subr.mxu0 0.0
    %627 = vmatpush1.msra.mxu0 0.0
    %628 = vmatprep.subr.mxu0 0.0
    %629 = vmatpush1.msra.mxu0 0.0
    %630 = vmatprep.subr.mxu0 0.0
    %631 = vmatpush1.msra.mxu0 0.0
    %632 = vmatprep.subr.mxu0 0.0
    %633 = vmatpush1.msra.mxu0 0.0
    %634 = vmatprep.subr.mxu0 0.0
    %635 = vmatpush1.msra.mxu0 0.0
    %636 = vmatprep.subr.mxu0 0.0
    %637 = vmatpush1.msra.mxu0 0.0
    %638 = vmatprep.subr.mxu0 0.0
    %639 = vmatpush1.msra.mxu0 0.0
    %640 = vmatprep.subr.mxu0 0.0
    %641 = vmatpush1.msra.mxu0 0.0
    %642 = vmatprep.subr.mxu0 0.0
    %643 = vmatpush1.msra.mxu0 0.0
    %644 = vmatprep.subr.mxu0 0.0
    %645 = vmatpush1.msra.mxu0 0.0
    %646 = vmatprep.subr.mxu0 0.0
    %647 = vmatpush1.msra.mxu0 0.0
    %648 = vmatprep.subr.mxu0 0.0
    %649 = vmatpush1.msra.mxu0 0.0
    %650 = vmatprep.subr.mxu0 0.0
    %651 = vmatpush1.msra.mxu0 0.0
    %652 = vmatprep.subr.mxu0 0.0
    %653 = vmatpush1.msra.mxu0 0.0
    %654 = vmatprep.subr.mxu0 0.0
    %655 = vmatpush1.msra.mxu0 0.0
    %656 = vmatprep.subr.mxu0 0.0
    %657 = vmatpush1.msra.mxu0 0.0
    %658 = vmatprep.subr.mxu0 0.0
    %659 = vmatpush1.msra.mxu0 0.0
    %660 = vmatprep.subr.mxu0 0.0
    %661 = vmatpush1.msra.mxu0 0.0
    %662 = vmatprep.subr.mxu0 0.0
    %663 = vmatpush1.msra.mxu0 0.0
    %664 = vmatprep.subr.mxu0 0.0
    %665 = vmatpush1.msra.mxu0 0.0
    %666 = vmatprep.subr.mxu0 0.0
    %667 = vmatpush1.msra.mxu0 0.0
    %668 = vmatprep.mubr.f32.mxu0 0.0
    %669 = vmatmul.mubr.f32.gmra.mrb[0].mxu0 %v599
    %v670 = vpop.f32.mrb[0].mxu0
    %v671 = vadd.f32 %v597, %v670
    %v672 = vpop.f32.mrb[0].mxu0
    %673 = vmatprep.mubr.f32.mxu0 0.0
    %674 = vmatmul.mubr.f32.gmra.mrb[0].mxu0 %v602
    %v675 = vpop.f32.mrb[0].mxu0
    %v676 = vadd.f32 %v597, %v675
    %v677 = vpop.f32.mrb[0].mxu0
    %678 = vdwg.mxu0
    %v679 = vadd.f32 %v37, %v671
    %v680 = vadd.f32 %v38, %v676
    %v681 = vlaneseq
    %v682 = vshrl.u32 %v681, 7
    %v683 = vsub.s32 2, %v682
    %v684 = vrot.slane %v75, %v683
    %v686 = vsel %vm80, %v679, 0
    %v689 = vsel %vm80, %v680, 0
    %691 = vmatprep.subr.mxu0 0.0
    %692 = vmatpush1.msra.mxu0 %v67
    %693 = vmatprep.subr.mxu0 0.0
    %694 = vmatpush1.msra.mxu0 %v68
    %695 = vmatprep.subr.mxu0 0.0
    %696 = vmatpush1.msra.mxu0 %v69
    %697 = vmatprep.subr.mxu0 0.0
    %698 = vmatpush1.msra.mxu0 %v70
    %699 = vmatprep.subr.mxu0 0.0
    %700 = vmatpush1.msra.mxu0 0.0
    %701 = vmatprep.subr.mxu0 0.0
    %702 = vmatpush1.msra.mxu0 0.0
    %703 = vmatprep.subr.mxu0 0.0
    %704 = vmatpush1.msra.mxu0 0.0
    %705 = vmatprep.subr.mxu0 0.0
    %706 = vmatpush1.msra.mxu0 0.0
    %707 = vmatprep.subr.mxu0 0.0
    %708 = vmatpush1.msra.mxu0 0.0
    %709 = vmatprep.subr.mxu0 0.0
    %710 = vmatpush1.msra.mxu0 0.0
    %711 = vmatprep.subr.mxu0 0.0
    %712 = vmatpush1.msra.mxu0 0.0
    %713 = vmatprep.subr.mxu0 0.0
    %714 = vmatpush1.msra.mxu0 0.0
    %715 = vmatprep.subr.mxu0 0.0
    %716 = vmatpush1.msra.mxu0 0.0
    %717 = vmatprep.subr.mxu0 0.0
    %718 = vmatpush1.msra.mxu0 0.0
    %719 = vmatprep.subr.mxu0 0.0
    %720 = vmatpush1.msra.mxu0 0.0
    %721 = vmatprep.subr.mxu0 0.0
    %722 = vmatpush1.msra.mxu0 0.0
    %723 = vmatprep.subr.mxu0 0.0
    %724 = vmatpush1.msra.mxu0 0.0
    %725 = vmatprep.subr.mxu0 0.0
    %726 = vmatpush1.msra.mxu0 0.0
    %727 = vmatprep.subr.mxu0 0.0
    %728 = vmatpush1.msra.mxu0 0.0
    %729 = vmatprep.subr.mxu0 0.0
    %730 = vmatpush1.msra.mxu0 0.0
    %731 = vmatprep.subr.mxu0 0.0
    %732 = vmatpush1.msra.mxu0 0.0
    %733 = vmatprep.subr.mxu0 0.0
    %734 = vmatpush1.msra.mxu0 0.0
    %735 = vmatprep.subr.mxu0 0.0
    %736 = vmatpush1.msra.mxu0 0.0
    %737 = vmatprep.subr.mxu0 0.0
    %738 = vmatpush1.msra.mxu0 0.0
    %739 = vmatprep.subr.mxu0 0.0
    %740 = vmatpush1.msra.mxu0 0.0
    %741 = vmatprep.subr.mxu0 0.0
    %742 = vmatpush1.msra.mxu0 0.0
    %743 = vmatprep.subr.mxu0 0.0
    %744 = vmatpush1.msra.mxu0 0.0
    %745 = vmatprep.subr.mxu0 0.0
    %746 = vmatpush1.msra.mxu0 0.0
    %747 = vmatprep.subr.mxu0 0.0
    %748 = vmatpush1.msra.mxu0 0.0
    %749 = vmatprep.subr.mxu0 0.0
    %750 = vmatpush1.msra.mxu0 0.0
    %751 = vmatprep.subr.mxu0 0.0
    %752 = vmatpush1.msra.mxu0 0.0
    %753 = vmatprep.subr.mxu0 0.0
    %754 = vmatpush1.msra.mxu0 0.0
    %755 = vmatprep.mubr.f32.mxu0 0.0
    %756 = vmatmul.mubr.f32.gmra.mrb[0].mxu0 %v686
    %v757 = vpop.f32.mrb[0].mxu0
    %v758 = vadd.f32 %v684, %v757
    %v759 = vpop.f32.mrb[0].mxu0
    %760 = vmatprep.mubr.f32.mxu0 0.0
    %761 = vmatmul.mubr.f32.gmra.mrb[0].mxu0 %v689
    %v762 = vpop.f32.mrb[0].mxu0
    %v763 = vadd.f32 %v684, %v762
    %v764 = vpop.f32.mrb[0].mxu0
    %765 = vdwg.mxu0
    %vm766 = vcmp.ge.f32.partialorder %v758, 0.0
    %vm767 = vcmp.ge.f32.partialorder %v763, 0.0
    %v768 = vmul.f32 %v758, 0.01
    %v769 = vmul.f32 %v763, 0.01
    %v770 = vsel %vm766, %v758, %v768
    %v771 = vsel %vm767, %v763, %v769
    %v772 = vlaneseq
    %v773 = vshrl.u32 %v772, 7
    %v774 = vsub.s32 3, %v773
    %v775 = vrot.slane %v75, %v774
    %v777 = vsel %vm80, %v770, 0
    %v780 = vsel %vm80, %v771, 0
    %782 = vmatprep.subr.mxu0 0.0
    %783 = vmatpush1.msra.mxu0 %v71
    %784 = vmatprep.subr.mxu0 0.0
    %785 = vmatpush1.msra.mxu0 %v72
    %786 = vmatprep.subr.mxu0 0.0
    %787 = vmatpush1.msra.mxu0 %v73
    %788 = vmatprep.subr.mxu0 0.0
    %789 = vmatpush1.msra.mxu0 %v74
    %790 = vmatprep.subr.mxu0 0.0
    %791 = vmatpush1.msra.mxu0 0.0
    %792 = vmatprep.subr.mxu0 0.0
    %793 = vmatpush1.msra.mxu0 0.0
    %794 = vmatprep.subr.mxu0 0.0
    %795 = vmatpush1.msra.mxu0 0.0
    %796 = vmatprep.subr.mxu0 0.0
    %797 = vmatpush1.msra.mxu0 0.0
    %798 = vmatprep.subr.mxu0 0.0
    %799 = vmatpush1.msra.mxu0 0.0
    %800 = vmatprep.subr.mxu0 0.0
    %801 = vmatpush1.msra.mxu0 0.0
    %802 = vmatprep.subr.mxu0 0.0
    %803 = vmatpush1.msra.mxu0 0.0
    %804 = vmatprep.subr.mxu0 0.0
    %805 = vmatpush1.msra.mxu0 0.0
    %806 = vmatprep.subr.mxu0 0.0
    %807 = vmatpush1.msra.mxu0 0.0
    %808 = vmatprep.subr.mxu0 0.0
    %809 = vmatpush1.msra.mxu0 0.0
    %810 = vmatprep.subr.mxu0 0.0
    %811 = vmatpush1.msra.mxu0 0.0
    %812 = vmatprep.subr.mxu0 0.0
    %813 = vmatpush1.msra.mxu0 0.0
    %814 = vmatprep.subr.mxu0 0.0
    %815 = vmatpush1.msra.mxu0 0.0
    %816 = vmatprep.subr.mxu0 0.0
    %817 = vmatpush1.msra.mxu0 0.0
    %818 = vmatprep.subr.mxu0 0.0
    %819 = vmatpush1.msra.mxu0 0.0
    %820 = vmatprep.subr.mxu0 0.0
    %821 = vmatpush1.msra.mxu0 0.0
    %822 = vmatprep.subr.mxu0 0.0
    %823 = vmatpush1.msra.mxu0 0.0
    %824 = vmatprep.subr.mxu0 0.0
    %825 = vmatpush1.msra.mxu0 0.0
    %826 = vmatprep.subr.mxu0 0.0
    %827 = vmatpush1.msra.mxu0 0.0
    %828 = vmatprep.subr.mxu0 0.0
    %829 = vmatpush1.msra.mxu0 0.0
    %830 = vmatprep.subr.mxu0 0.0
    %831 = vmatpush1.msra.mxu0 0.0
    %832 = vmatprep.subr.mxu0 0.0
    %833 = vmatpush1.msra.mxu0 0.0
    %834 = vmatprep.subr.mxu0 0.0
    %835 = vmatpush1.msra.mxu0 0.0
    %836 = vmatprep.subr.mxu0 0.0
    %837 = vmatpush1.msra.mxu0 0.0
    %838 = vmatprep.subr.mxu0 0.0
    %839 = vmatpush1.msra.mxu0 0.0
    %840 = vmatprep.subr.mxu0 0.0
    %841 = vmatpush1.msra.mxu0 0.0
    %842 = vmatprep.subr.mxu0 0.0
    %843 = vmatpush1.msra.mxu0 0.0
    %844 = vmatprep.subr.mxu0 0.0
    %845 = vmatpush1.msra.mxu0 0.0
    %846 = vmatprep.mubr.f32.mxu0 0.0
    %847 = vmatmul.mubr.f32.gmra.mrb[0].mxu0 %v777
    %v848 = vpop.f32.mrb[0].mxu0
    %v849 = vadd.f32 %v775, %v848
    %v850 = vpop.f32.mrb[0].mxu0
    %851 = vmatprep.mubr.f32.mxu0 0.0
    %852 = vmatmul.mubr.f32.gmra.mrb[0].mxu0 %v780
    %v853 = vpop.f32.mrb[0].mxu0
    %v854 = vadd.f32 %v775, %v853
    %v855 = vpop.f32.mrb[0].mxu0
    %856 = vdwg.mxu0
    %857 = vst.msk [vmem:[#allocation5] sm:$0xff] %vm80, %v849
    %858 = vst.msk [vmem:[#allocation5 + $0x8] sm:$0xff] %vm80, %v854
    // Predicated region
    $region26: #{ray_transformer_block.1} parent=1 // pred_check
      _
    $region27: #{ray_transformer_block.1} parent=1 // pred_check_branch
      %860 = sbr.rel (0) target = $region29
    $region28: #{ray_transformer_block.1} parent=1 // pred_region
      %s862 = ssub.s32 256, 256
      %863 = vsyncadd [#allocation4], %s862
      %s864 = sshll.u32 [#allocation5], 4
      %s865 = int_to_ptr.vmem [resolvable:$true] %s864
      %870 = dma.vmem_to_hbm [thread:$0]  %s865, 256, %s5, [#allocation4], 128, 128, 8
    $region29: #{ray_transformer_block.1} parent=1 // pred_fallthru
      _
    // Predicated region
    $region30: #{ray_transformer_block.1} parent=1 // pred_check
      _
    $region31: #{ray_transformer_block.1} parent=1 // pred_check_branch
      %872 = sbr.rel (0) target = $region33
    $region32: #{ray_transformer_block.1} parent=1 // pred_region
      %873 = dma.done [#allocation4], 256
    $region33: #{ray_transformer_block.1} parent=1 // pred_fallthru
      _
    %874 = vsyncpa [#allocation3], 1
    %875 = vsyncpa [#allocation4], 1

</llo_original>
